<compile_context>
chip_gen: v5e
topology: v5e:2x2
jax: 0.10.0
libtpu: 0.0.40
codegen_flags: <defaults>
</compile_context>

<pallas_src>
import functools

import jax
import jax.numpy as jnp
import numpy as np
from jax import lax
from jax.experimental import pallas as pl
from jax.experimental.pallas import tpu as pltpu


def _seq_encoder_kernel(x_ref, coords_ref, w_ref, shift_ref, o_ref, patch_ref, *, H, W):
    # x_ref:      (C_in, S, HWp) f32  one batch element, spatial flattened onto lanes
    # coords_ref: (2, HWp) int32      row 0 = h index, row 1 = w index of each lane
    # w_ref:      (C_out, 9*C_in) bf16  conv weights with BN scale folded in
    # shift_ref:  (C_out, 1) f32      BN shift (beta - mean*scale)
    # o_ref:      (C_out, HWp) f32    lane-dense output block
    # patch_ref:  (9*C_in, HWp) f32   VMEM scratch holding the im2col patch matrix
    C_in = x_ref.shape[0]
    HWp = x_ref.shape[2]

    # Fused sequence-sum over S (exactly commutes with the conv).
    xs = jnp.sum(x_ref[...], axis=1)                       # (C_in, HWp) f32

    hh = coords_ref[0:1, :]                                # (1, HWp)
    ww = coords_ref[1:2, :]                                # (1, HWp)

    # In-kernel im2col: 9 static lane-rotations (XLU) + zero-pad boundary masks (VPU).
    for dy in range(3):
        for dx in range(3):
            dyo, dxo = dy - 1, dx - 1
            k = dyo * W + dxo                              # flat offset of this tap
            tap = xs if k == 0 else pltpu.roll(xs, shift=(-k) % HWp, axis=1)
            valid = ((hh + dyo >= 0) & (hh + dyo < H) &
                     (ww + dxo >= 0) & (ww + dxo < W))
            row0 = (dy * 3 + dx) * C_in                    # tap-major, channel-minor
            patch_ref[pl.ds(row0, C_in), :] = jnp.where(valid, tap, 0.0)

    # Single MXU matmul: (C_out, 9*C_in) @ (9*C_in, HWp), bf16 operands, f32 accumulate.
    y = jnp.dot(w_ref[...], patch_ref[...].astype(jnp.bfloat16),
                preferred_element_type=jnp.float32)

    # Fused BN shift (scale already folded into the weights) + ReLU.
    o_ref[...] = jnp.maximum(y + shift_ref[...], 0.0).astype(o_ref.dtype)


def sequence_encoder_pallas(x, conv_w, bn_gamma, bn_beta, bn_mean, bn_var, eps,
                            out_dtype=jnp.float32):
    """x: (B, C_in, S, H, W) f32, conv_w: (C_out, C_in, 3, 3). Returns (B, C_out, H, W)."""
    B, C_in, S, H, W = x.shape
    C_out = conv_w.shape[0]
    HW = H * W
    HWp = ((HW + 127) // 128) * 128          # lane-dense padding of the flat spatial axis
    KKC = 9 * C_in

    # Free reshape (collapses only trailing dims); optional zero-pad of the lane axis.
    xr = x.reshape(B, C_in, S, HW)
    if HWp != HW:
        xr = jnp.pad(xr, ((0, 0), (0, 0), (0, 0), (0, HWp - HW)))

    # (h, w) coordinate of every lane position — tiny constant, avoids in-kernel div/mod.
    pos = jnp.arange(HWp, dtype=jnp.int32)
    coords = jnp.stack([pos // W, pos % W]).astype(jnp.int32)          # (2, HWp)

    # Fold inference-mode BatchNorm scale into the conv weights; keep shift for the epilogue.
    inv_std = 1.0 / jnp.sqrt(bn_var + eps)
    scale = bn_gamma * inv_std                                          # (C_out,)
    # (C_out, C_in, 3, 3) -> (C_out, 3, 3, C_in) -> (C_out, 9*C_in); K = (dy*3+dx)*C_in + c
    w_mat = jnp.transpose(conv_w, (0, 2, 3, 1)).reshape(C_out, KKC)
    w_mat = (w_mat * scale[:, None]).astype(jnp.bfloat16)
    shift = (bn_beta - bn_mean * scale).reshape(C_out, 1).astype(jnp.float32)

    kernel = functools.partial(_seq_encoder_kernel, H=H, W=W)

    out = pl.pallas_call(
        kernel,
        out_shape=jax.ShapeDtypeStruct((B, C_out, HWp), out_dtype),
        grid=(B,),
        in_specs=[
            pl.BlockSpec((None, C_in, S, HWp), lambda b: (b, 0, 0, 0)),  # batch squeezed
            pl.BlockSpec((2, HWp), lambda b: (0, 0)),
            pl.BlockSpec((C_out, KKC), lambda b: (0, 0)),
            pl.BlockSpec((C_out, 1), lambda b: (0, 0)),
        ],
        out_specs=pl.BlockSpec((None, C_out, HWp), lambda b: (b, 0, 0)),
        scratch_shapes=[pltpu.VMEM((KKC, HWp), jnp.float32)],
        compiler_params=pltpu.CompilerParams(dimension_semantics=("parallel",)),
    )(xr, coords, w_mat, shift)

    # Crop lane padding (no-op when HW is already a multiple of 128) and reshape to NCHW.
    return out[:, :, :HW].reshape(B, C_out, H, W)


def reference(x, conv_w, bn_gamma, bn_beta, bn_mean, bn_var, eps):
    """Pure-JAX f32 reference mirroring the PyTorch forward (inference-mode BN)."""
    xs = jnp.sum(x, axis=2)  # (B, C_in, H, W)
    y = lax.conv_general_dilated(
        xs, conv_w, window_strides=(1, 1), padding=((1, 1), (1, 1)),
        dimension_numbers=("NCHW", "OIHW", "NCHW"))
    scale = bn_gamma / jnp.sqrt(bn_var + eps)
    shift = bn_beta - bn_mean * scale
    y = y * scale[None, :, None, None] + shift[None, :, None, None]
    return jnp.maximum(y, 0.0)


if __name__ == "__main__":
    B, C_in, S, H, W = 2, 4, 8, 16, 16
    C_out = 64     # forced by bn_row = nn.BatchNorm2d(64)
    EPS = 64.0     # literal nn.BatchNorm2d(64, 64): second positional arg is eps

    key = jax.random.PRNGKey(0)
    kx, kw, kg, kb, km, kv = jax.random.split(key, 6)
    x = jax.random.normal(kx, (B, C_in, S, H, W), jnp.float32)
    conv_w = 0.1 * jax.random.normal(kw, (C_out, C_in, 3, 3), jnp.float32)
    bn_gamma = 1.0 + 0.1 * jax.random.normal(kg, (C_out,), jnp.float32)
    bn_beta = 0.1 * jax.random.normal(kb, (C_out,), jnp.float32)
    bn_mean = 0.1 * jax.random.normal(km, (C_out,), jnp.float32)
    bn_var = jax.random.uniform(kv, (C_out,), jnp.float32, minval=0.5, maxval=1.5)

    out = sequence_encoder_pallas(x, conv_w, bn_gamma, bn_beta, bn_mean, bn_var, EPS)
    out = jax.block_until_ready(out)

    ref = reference(x, conv_w, bn_gamma, bn_beta, bn_mean, bn_var, EPS)
    assert out.shape == (B, C_out, H, W)
    # bf16 matmul operands (f32 accumulate) -> relaxed but still tight tolerance.
    np.testing.assert_allclose(np.asarray(out), np.asarray(ref), atol=2e-2, rtol=2e-2)
    print("KERNEL_OK")
</pallas_src>

<mosaic_0001>
module attributes {stable_mosaic.version = 11 : i64} {
  func.func @_seq_encoder_kernel(%arg0: i32, %arg1: memref<1x4x8x256xf32, #tpu.memory_space<vmem>>, %arg2: memref<2x256xi32, #tpu.memory_space<vmem>>, %arg3: memref<64x36xbf16, #tpu.memory_space<vmem>>, %arg4: memref<64x1xf32, #tpu.memory_space<vmem>>, %arg5: memref<1x64x256xf32, #tpu.memory_space<vmem>>, %arg6: memref<36x256xf32, #tpu.memory_space<vmem>>) attributes {dimension_semantics = [#tpu.dimension_semantics<parallel>], iteration_bounds = array<i64: 2>, scalar_prefetch = 0 : i64, scratch_operands = 1 : i64, tpu.core_type = #tpu.core_type<tc>, window_params = [{transform_indices = @transform_0, window_bounds = array<i64: 1, 4, 8, 256>}, {pipeline_mode = #tpu.pipeline_mode<synchronous>, transform_indices = @transform_1, window_bounds = array<i64: 2, 256>}, {pipeline_mode = #tpu.pipeline_mode<synchronous>, transform_indices = @transform_2, window_bounds = array<i64: 64, 36>}, {pipeline_mode = #tpu.pipeline_mode<synchronous>, transform_indices = @transform_3, window_bounds = array<i64: 64, 1>}, {transform_indices = @transform_4, window_bounds = array<i64: 1, 64, 256>}]} {
    %c0 = arith.constant 0 : index
    %c0_0 = arith.constant 0 : index
    %c0_1 = arith.constant 0 : index
    %c0_2 = arith.constant 0 : index
    %0 = vector.load %arg1[%c0, %c0_0, %c0_1, %c0_2] : memref<1x4x8x256xf32, #tpu.memory_space<vmem>>, vector<1x4x8x256xf32>
    %1 = vector.shape_cast %0 : vector<1x4x8x256xf32> to vector<4x8x256xf32>
    %cst = arith.constant dense<0.000000e+00> : vector<4x256xf32>
    %2 = vector.multi_reduction <add>, %1, %cst [1] : vector<4x8x256xf32> to vector<4x256xf32>
    %c0_3 = arith.constant 0 : index
    %c0_4 = arith.constant 0 : index
    %3 = vector.load %arg2[%c0_3, %c0_4] : memref<2x256xi32, #tpu.memory_space<vmem>>, vector<1x256xi32>
    %c1 = arith.constant 1 : index
    %c0_5 = arith.constant 0 : index
    %4 = vector.load %arg2[%c1, %c0_5] : memref<2x256xi32, #tpu.memory_space<vmem>>, vector<1x256xi32>
    %c17_i32 = arith.constant 17 : i32
    %5 = tpu.dynamic_rotate %2 by %c17_i32 dim 1 : vector<4x256xf32>, i32 -> vector<4x256xf32>
    %c-1_i32 = arith.constant -1 : i32
    %6 = vector.broadcast %c-1_i32 : i32 to vector<1x256xi32>
    %7 = arith.addi %3, %6 : vector<1x256xi32>
    %c0_i32 = arith.constant 0 : i32
    %8 = vector.broadcast %c0_i32 : i32 to vector<1x256xi32>
    %9 = arith.cmpi sge, %7, %8 : vector<1x256xi32>
    %c-1_i32_6 = arith.constant -1 : i32
    %10 = vector.broadcast %c-1_i32_6 : i32 to vector<1x256xi32>
    %11 = arith.addi %3, %10 : vector<1x256xi32>
    %c16_i32 = arith.constant 16 : i32
    %12 = vector.broadcast %c16_i32 : i32 to vector<1x256xi32>
    %13 = arith.cmpi slt, %11, %12 : vector<1x256xi32>
    %14 = arith.andi %9, %13 : vector<1x256xi1>
    %c-1_i32_7 = arith.constant -1 : i32
    %15 = vector.broadcast %c-1_i32_7 : i32 to vector<1x256xi32>
    %16 = arith.addi %4, %15 : vector<1x256xi32>
    %c0_i32_8 = arith.constant 0 : i32
    %17 = vector.broadcast %c0_i32_8 : i32 to vector<1x256xi32>
    %18 = arith.cmpi sge, %16, %17 : vector<1x256xi32>
    %19 = arith.andi %14, %18 : vector<1x256xi1>
    %c-1_i32_9 = arith.constant -1 : i32
    %20 = vector.broadcast %c-1_i32_9 : i32 to vector<1x256xi32>
    %21 = arith.addi %4, %20 : vector<1x256xi32>
    %c16_i32_10 = arith.constant 16 : i32
    %22 = vector.broadcast %c16_i32_10 : i32 to vector<1x256xi32>
    %23 = arith.cmpi slt, %21, %22 : vector<1x256xi32>
    %24 = arith.andi %19, %23 : vector<1x256xi1>
    %cst_11 = arith.constant 0.000000e+00 : f32
    %25 = vector.shape_cast %24 : vector<1x256xi1> to vector<1x256xi1>
    %26 = vector.broadcast %25 : vector<1x256xi1> to vector<4x256xi1>
    %27 = vector.broadcast %cst_11 : f32 to vector<4x256xf32>
    %28 = arith.select %26, %5, %27 : vector<4x256xi1>, vector<4x256xf32>
    %c0_12 = arith.constant 0 : index
    %c0_13 = arith.constant 0 : index
    %29 = vector.load %arg6[%c0_12, %c0_13] : memref<36x256xf32, #tpu.memory_space<vmem>>, vector<4x256xf32>
    tpu.vector_store %arg6[%c0_12, %c0_13], %28 {strides = array<i32>} : memref<36x256xf32, #tpu.memory_space<vmem>>, vector<4x256xf32>,
    %c16_i32_14 = arith.constant 16 : i32
    %30 = tpu.dynamic_rotate %2 by %c16_i32_14 dim 1 : vector<4x256xf32>, i32 -> vector<4x256xf32>
    %c-1_i32_15 = arith.constant -1 : i32
    %31 = vector.broadcast %c-1_i32_15 : i32 to vector<1x256xi32>
    %32 = arith.addi %3, %31 : vector<1x256xi32>
    %c0_i32_16 = arith.constant 0 : i32
    %33 = vector.broadcast %c0_i32_16 : i32 to vector<1x256xi32>
    %34 = arith.cmpi sge, %32, %33 : vector<1x256xi32>
    %c-1_i32_17 = arith.constant -1 : i32
    %35 = vector.broadcast %c-1_i32_17 : i32 to vector<1x256xi32>
    %36 = arith.addi %3, %35 : vector<1x256xi32>
    %c16_i32_18 = arith.constant 16 : i32
    %37 = vector.broadcast %c16_i32_18 : i32 to vector<1x256xi32>
    %38 = arith.cmpi slt, %36, %37 : vector<1x256xi32>
    %39 = arith.andi %34, %38 : vector<1x256xi1>
    %c0_i32_19 = arith.constant 0 : i32
    %40 = vector.broadcast %c0_i32_19 : i32 to vector<1x256xi32>
    %41 = arith.addi %4, %40 : vector<1x256xi32>
    %c0_i32_20 = arith.constant 0 : i32
    %42 = vector.broadcast %c0_i32_20 : i32 to vector<1x256xi32>
    %43 = arith.cmpi sge, %41, %42 : vector<1x256xi32>
    %44 = arith.andi %39, %43 : vector<1x256xi1>
    %c0_i32_21 = arith.constant 0 : i32
    %45 = vector.broadcast %c0_i32_21 : i32 to vector<1x256xi32>
    %46 = arith.addi %4, %45 : vector<1x256xi32>
    %c16_i32_22 = arith.constant 16 : i32
    %47 = vector.broadcast %c16_i32_22 : i32 to vector<1x256xi32>
    %48 = arith.cmpi slt, %46, %47 : vector<1x256xi32>
    %49 = arith.andi %44, %48 : vector<1x256xi1>
    %cst_23 = arith.constant 0.000000e+00 : f32
    %50 = vector.shape_cast %49 : vector<1x256xi1> to vector<1x256xi1>
    %51 = vector.broadcast %50 : vector<1x256xi1> to vector<4x256xi1>
    %52 = vector.broadcast %cst_23 : f32 to vector<4x256xf32>
    %53 = arith.select %51, %30, %52 : vector<4x256xi1>, vector<4x256xf32>
    %c4 = arith.constant 4 : index
    %c0_24 = arith.constant 0 : index
    %54 = vector.load %arg6[%c4, %c0_24] : memref<36x256xf32, #tpu.memory_space<vmem>>, vector<4x256xf32>
    tpu.vector_store %arg6[%c4, %c0_24], %53 {strides = array<i32>} : memref<36x256xf32, #tpu.memory_space<vmem>>, vector<4x256xf32>,
    %c15_i32 = arith.constant 15 : i32
    %55 = tpu.dynamic_rotate %2 by %c15_i32 dim 1 : vector<4x256xf32>, i32 -> vector<4x256xf32>
    %c-1_i32_25 = arith.constant -1 : i32
    %56 = vector.broadcast %c-1_i32_25 : i32 to vector<1x256xi32>
    %57 = arith.addi %3, %56 : vector<1x256xi32>
    %c0_i32_26 = arith.constant 0 : i32
    %58 = vector.broadcast %c0_i32_26 : i32 to vector<1x256xi32>
    %59 = arith.cmpi sge, %57, %58 : vector<1x256xi32>
    %c-1_i32_27 = arith.constant -1 : i32
    %60 = vector.broadcast %c-1_i32_27 : i32 to vector<1x256xi32>
    %61 = arith.addi %3, %60 : vector<1x256xi32>
    %c16_i32_28 = arith.constant 16 : i32
    %62 = vector.broadcast %c16_i32_28 : i32 to vector<1x256xi32>
    %63 = arith.cmpi slt, %61, %62 : vector<1x256xi32>
    %64 = arith.andi %59, %63 : vector<1x256xi1>
    %c1_i32 = arith.constant 1 : i32
    %65 = vector.broadcast %c1_i32 : i32 to vector<1x256xi32>
    %66 = arith.addi %4, %65 : vector<1x256xi32>
    %c0_i32_29 = arith.constant 0 : i32
    %67 = vector.broadcast %c0_i32_29 : i32 to vector<1x256xi32>
    %68 = arith.cmpi sge, %66, %67 : vector<1x256xi32>
    %69 = arith.andi %64, %68 : vector<1x256xi1>
    %c1_i32_30 = arith.constant 1 : i32
    %70 = vector.broadcast %c1_i32_30 : i32 to vector<1x256xi32>
    %71 = arith.addi %4, %70 : vector<1x256xi32>
    %c16_i32_31 = arith.constant 16 : i32
    %72 = vector.broadcast %c16_i32_31 : i32 to vector<1x256xi32>
    %73 = arith.cmpi slt, %71, %72 : vector<1x256xi32>
    %74 = arith.andi %69, %73 : vector<1x256xi1>
    %cst_32 = arith.constant 0.000000e+00 : f32
    %75 = vector.shape_cast %74 : vector<1x256xi1> to vector<1x256xi1>
    %76 = vector.broadcast %75 : vector<1x256xi1> to vector<4x256xi1>
    %77 = vector.broadcast %cst_32 : f32 to vector<4x256xf32>
    %78 = arith.select %76, %55, %77 : vector<4x256xi1>, vector<4x256xf32>
    %c8 = arith.constant 8 : index
    %c0_33 = arith.constant 0 : index
    %79 = vector.load %arg6[%c8, %c0_33] : memref<36x256xf32, #tpu.memory_space<vmem>>, vector<4x256xf32>
    tpu.vector_store %arg6[%c8, %c0_33], %78 {strides = array<i32>} : memref<36x256xf32, #tpu.memory_space<vmem>>, vector<4x256xf32>,
    %c1_i32_34 = arith.constant 1 : i32
    %80 = tpu.dynamic_rotate %2 by %c1_i32_34 dim 1 : vector<4x256xf32>, i32 -> vector<4x256xf32>
    %c0_i32_35 = arith.constant 0 : i32
    %81 = vector.broadcast %c0_i32_35 : i32 to vector<1x256xi32>
    %82 = arith.addi %3, %81 : vector<1x256xi32>
    %c0_i32_36 = arith.constant 0 : i32
    %83 = vector.broadcast %c0_i32_36 : i32 to vector<1x256xi32>
    %84 = arith.cmpi sge, %82, %83 : vector<1x256xi32>
    %c0_i32_37 = arith.constant 0 : i32
    %85 = vector.broadcast %c0_i32_37 : i32 to vector<1x256xi32>
    %86 = arith.addi %3, %85 : vector<1x256xi32>
    %c16_i32_38 = arith.constant 16 : i32
    %87 = vector.broadcast %c16_i32_38 : i32 to vector<1x256xi32>
    %88 = arith.cmpi slt, %86, %87 : vector<1x256xi32>
    %89 = arith.andi %84, %88 : vector<1x256xi1>
    %c-1_i32_39 = arith.constant -1 : i32
    %90 = vector.broadcast %c-1_i32_39 : i32 to vector<1x256xi32>
    %91 = arith.addi %4, %90 : vector<1x256xi32>
    %c0_i32_40 = arith.constant 0 : i32
    %92 = vector.broadcast %c0_i32_40 : i32 to vector<1x256xi32>
    %93 = arith.cmpi sge, %91, %92 : vector<1x256xi32>
    %94 = arith.andi %89, %93 : vector<1x256xi1>
    %c-1_i32_41 = arith.constant -1 : i32
    %95 = vector.broadcast %c-1_i32_41 : i32 to vector<1x256xi32>
    %96 = arith.addi %4, %95 : vector<1x256xi32>
    %c16_i32_42 = arith.constant 16 : i32
    %97 = vector.broadcast %c16_i32_42 : i32 to vector<1x256xi32>
    %98 = arith.cmpi slt, %96, %97 : vector<1x256xi32>
    %99 = arith.andi %94, %98 : vector<1x256xi1>
    %cst_43 = arith.constant 0.000000e+00 : f32
    %100 = vector.shape_cast %99 : vector<1x256xi1> to vector<1x256xi1>
    %101 = vector.broadcast %100 : vector<1x256xi1> to vector<4x256xi1>
    %102 = vector.broadcast %cst_43 : f32 to vector<4x256xf32>
    %103 = arith.select %101, %80, %102 : vector<4x256xi1>, vector<4x256xf32>
    %c12 = arith.constant 12 : index
    %c0_44 = arith.constant 0 : index
    %104 = vector.load %arg6[%c12, %c0_44] : memref<36x256xf32, #tpu.memory_space<vmem>>, vector<4x256xf32>
    tpu.vector_store %arg6[%c12, %c0_44], %103 {strides = array<i32>} : memref<36x256xf32, #tpu.memory_space<vmem>>, vector<4x256xf32>,
    %c0_i32_45 = arith.constant 0 : i32
    %105 = vector.broadcast %c0_i32_45 : i32 to vector<1x256xi32>
    %106 = arith.addi %3, %105 : vector<1x256xi32>
    %c0_i32_46 = arith.constant 0 : i32
    %107 = vector.broadcast %c0_i32_46 : i32 to vector<1x256xi32>
    %108 = arith.cmpi sge, %106, %107 : vector<1x256xi32>
    %c0_i32_47 = arith.constant 0 : i32
    %109 = vector.broadcast %c0_i32_47 : i32 to vector<1x256xi32>
    %110 = arith.addi %3, %109 : vector<1x256xi32>
    %c16_i32_48 = arith.constant 16 : i32
    %111 = vector.broadcast %c16_i32_48 : i32 to vector<1x256xi32>
    %112 = arith.cmpi slt, %110, %111 : vector<1x256xi32>
    %113 = arith.andi %108, %112 : vector<1x256xi1>
    %c0_i32_49 = arith.constant 0 : i32
    %114 = vector.broadcast %c0_i32_49 : i32 to vector<1x256xi32>
    %115 = arith.addi %4, %114 : vector<1x256xi32>
    %c0_i32_50 = arith.constant 0 : i32
    %116 = vector.broadcast %c0_i32_50 : i32 to vector<1x256xi32>
    %117 = arith.cmpi sge, %115, %116 : vector<1x256xi32>
    %118 = arith.andi %113, %117 : vector<1x256xi1>
    %c0_i32_51 = arith.constant 0 : i32
    %119 = vector.broadcast %c0_i32_51 : i32 to vector<1x256xi32>
    %120 = arith.addi %4, %119 : vector<1x256xi32>
    %c16_i32_52 = arith.constant 16 : i32
    %121 = vector.broadcast %c16_i32_52 : i32 to vector<1x256xi32>
    %122 = arith.cmpi slt, %120, %121 : vector<1x256xi32>
    %123 = arith.andi %118, %122 : vector<1x256xi1>
    %cst_53 = arith.constant 0.000000e+00 : f32
    %124 = vector.shape_cast %123 : vector<1x256xi1> to vector<1x256xi1>
    %125 = vector.broadcast %124 : vector<1x256xi1> to vector<4x256xi1>
    %126 = vector.broadcast %cst_53 : f32 to vector<4x256xf32>
    %127 = arith.select %125, %2, %126 : vector<4x256xi1>, vector<4x256xf32>
    %c16 = arith.constant 16 : index
    %c0_54 = arith.constant 0 : index
    %128 = vector.load %arg6[%c16, %c0_54] : memref<36x256xf32, #tpu.memory_space<vmem>>, vector<4x256xf32>
    tpu.vector_store %arg6[%c16, %c0_54], %127 {strides = array<i32>} : memref<36x256xf32, #tpu.memory_space<vmem>>, vector<4x256xf32>,
    %c255_i32 = arith.constant 255 : i32
    %129 = tpu.dynamic_rotate %2 by %c255_i32 dim 1 : vector<4x256xf32>, i32 -> vector<4x256xf32>
    %c0_i32_55 = arith.constant 0 : i32
    %130 = vector.broadcast %c0_i32_55 : i32 to vector<1x256xi32>
    %131 = arith.addi %3, %130 : vector<1x256xi32>
    %c0_i32_56 = arith.constant 0 : i32
    %132 = vector.broadcast %c0_i32_56 : i32 to vector<1x256xi32>
    %133 = arith.cmpi sge, %131, %132 : vector<1x256xi32>
    %c0_i32_57 = arith.constant 0 : i32
    %134 = vector.broadcast %c0_i32_57 : i32 to vector<1x256xi32>
    %135 = arith.addi %3, %134 : vector<1x256xi32>
    %c16_i32_58 = arith.constant 16 : i32
    %136 = vector.broadcast %c16_i32_58 : i32 to vector<1x256xi32>
    %137 = arith.cmpi slt, %135, %136 : vector<1x256xi32>
    %138 = arith.andi %133, %137 : vector<1x256xi1>
    %c1_i32_59 = arith.constant 1 : i32
    %139 = vector.broadcast %c1_i32_59 : i32 to vector<1x256xi32>
    %140 = arith.addi %4, %139 : vector<1x256xi32>
    %c0_i32_60 = arith.constant 0 : i32
    %141 = vector.broadcast %c0_i32_60 : i32 to vector<1x256xi32>
    %142 = arith.cmpi sge, %140, %141 : vector<1x256xi32>
    %143 = arith.andi %138, %142 : vector<1x256xi1>
    %c1_i32_61 = arith.constant 1 : i32
    %144 = vector.broadcast %c1_i32_61 : i32 to vector<1x256xi32>
    %145 = arith.addi %4, %144 : vector<1x256xi32>
    %c16_i32_62 = arith.constant 16 : i32
    %146 = vector.broadcast %c16_i32_62 : i32 to vector<1x256xi32>
    %147 = arith.cmpi slt, %145, %146 : vector<1x256xi32>
    %148 = arith.andi %143, %147 : vector<1x256xi1>
    %cst_63 = arith.constant 0.000000e+00 : f32
    %149 = vector.shape_cast %148 : vector<1x256xi1> to vector<1x256xi1>
    %150 = vector.broadcast %149 : vector<1x256xi1> to vector<4x256xi1>
    %151 = vector.broadcast %cst_63 : f32 to vector<4x256xf32>
    %152 = arith.select %150, %129, %151 : vector<4x256xi1>, vector<4x256xf32>
    %c20 = arith.constant 20 : index
    %c0_64 = arith.constant 0 : index
    %153 = vector.load %arg6[%c20, %c0_64] : memref<36x256xf32, #tpu.memory_space<vmem>>, vector<4x256xf32>
    tpu.vector_store %arg6[%c20, %c0_64], %152 {strides = array<i32>} : memref<36x256xf32, #tpu.memory_space<vmem>>, vector<4x256xf32>,
    %c241_i32 = arith.constant 241 : i32
    %154 = tpu.dynamic_rotate %2 by %c241_i32 dim 1 : vector<4x256xf32>, i32 -> vector<4x256xf32>
    %c1_i32_65 = arith.constant 1 : i32
    %155 = vector.broadcast %c1_i32_65 : i32 to vector<1x256xi32>
    %156 = arith.addi %3, %155 : vector<1x256xi32>
    %c0_i32_66 = arith.constant 0 : i32
    %157 = vector.broadcast %c0_i32_66 : i32 to vector<1x256xi32>
    %158 = arith.cmpi sge, %156, %157 : vector<1x256xi32>
    %c1_i32_67 = arith.constant 1 : i32
    %159 = vector.broadcast %c1_i32_67 : i32 to vector<1x256xi32>
    %160 = arith.addi %3, %159 : vector<1x256xi32>
    %c16_i32_68 = arith.constant 16 : i32
    %161 = vector.broadcast %c16_i32_68 : i32 to vector<1x256xi32>
    %162 = arith.cmpi slt, %160, %161 : vector<1x256xi32>
    %163 = arith.andi %158, %162 : vector<1x256xi1>
    %c-1_i32_69 = arith.constant -1 : i32
    %164 = vector.broadcast %c-1_i32_69 : i32 to vector<1x256xi32>
    %165 = arith.addi %4, %164 : vector<1x256xi32>
    %c0_i32_70 = arith.constant 0 : i32
    %166 = vector.broadcast %c0_i32_70 : i32 to vector<1x256xi32>
    %167 = arith.cmpi sge, %165, %166 : vector<1x256xi32>
    %168 = arith.andi %163, %167 : vector<1x256xi1>
    %c-1_i32_71 = arith.constant -1 : i32
    %169 = vector.broadcast %c-1_i32_71 : i32 to vector<1x256xi32>
    %170 = arith.addi %4, %169 : vector<1x256xi32>
    %c16_i32_72 = arith.constant 16 : i32
    %171 = vector.broadcast %c16_i32_72 : i32 to vector<1x256xi32>
    %172 = arith.cmpi slt, %170, %171 : vector<1x256xi32>
    %173 = arith.andi %168, %172 : vector<1x256xi1>
    %cst_73 = arith.constant 0.000000e+00 : f32
    %174 = vector.shape_cast %173 : vector<1x256xi1> to vector<1x256xi1>
    %175 = vector.broadcast %174 : vector<1x256xi1> to vector<4x256xi1>
    %176 = vector.broadcast %cst_73 : f32 to vector<4x256xf32>
    %177 = arith.select %175, %154, %176 : vector<4x256xi1>, vector<4x256xf32>
    %c24 = arith.constant 24 : index
    %c0_74 = arith.constant 0 : index
    %178 = vector.load %arg6[%c24, %c0_74] : memref<36x256xf32, #tpu.memory_space<vmem>>, vector<4x256xf32>
    tpu.vector_store %arg6[%c24, %c0_74], %177 {strides = array<i32>} : memref<36x256xf32, #tpu.memory_space<vmem>>, vector<4x256xf32>,
    %c240_i32 = arith.constant 240 : i32
    %179 = tpu.dynamic_rotate %2 by %c240_i32 dim 1 : vector<4x256xf32>, i32 -> vector<4x256xf32>
    %c1_i32_75 = arith.constant 1 : i32
    %180 = vector.broadcast %c1_i32_75 : i32 to vector<1x256xi32>
    %181 = arith.addi %3, %180 : vector<1x256xi32>
    %c0_i32_76 = arith.constant 0 : i32
    %182 = vector.broadcast %c0_i32_76 : i32 to vector<1x256xi32>
    %183 = arith.cmpi sge, %181, %182 : vector<1x256xi32>
    %c1_i32_77 = arith.constant 1 : i32
    %184 = vector.broadcast %c1_i32_77 : i32 to vector<1x256xi32>
    %185 = arith.addi %3, %184 : vector<1x256xi32>
    %c16_i32_78 = arith.constant 16 : i32
    %186 = vector.broadcast %c16_i32_78 : i32 to vector<1x256xi32>
    %187 = arith.cmpi slt, %185, %186 : vector<1x256xi32>
    %188 = arith.andi %183, %187 : vector<1x256xi1>
    %c0_i32_79 = arith.constant 0 : i32
    %189 = vector.broadcast %c0_i32_79 : i32 to vector<1x256xi32>
    %190 = arith.addi %4, %189 : vector<1x256xi32>
    %c0_i32_80 = arith.constant 0 : i32
    %191 = vector.broadcast %c0_i32_80 : i32 to vector<1x256xi32>
    %192 = arith.cmpi sge, %190, %191 : vector<1x256xi32>
    %193 = arith.andi %188, %192 : vector<1x256xi1>
    %c0_i32_81 = arith.constant 0 : i32
    %194 = vector.broadcast %c0_i32_81 : i32 to vector<1x256xi32>
    %195 = arith.addi %4, %194 : vector<1x256xi32>
    %c16_i32_82 = arith.constant 16 : i32
    %196 = vector.broadcast %c16_i32_82 : i32 to vector<1x256xi32>
    %197 = arith.cmpi slt, %195, %196 : vector<1x256xi32>
    %198 = arith.andi %193, %197 : vector<1x256xi1>
    %cst_83 = arith.constant 0.000000e+00 : f32
    %199 = vector.shape_cast %198 : vector<1x256xi1> to vector<1x256xi1>
    %200 = vector.broadcast %199 : vector<1x256xi1> to vector<4x256xi1>
    %201 = vector.broadcast %cst_83 : f32 to vector<4x256xf32>
    %202 = arith.select %200, %179, %201 : vector<4x256xi1>, vector<4x256xf32>
    %c28 = arith.constant 28 : index
    %c0_84 = arith.constant 0 : index
    %203 = vector.load %arg6[%c28, %c0_84] : memref<36x256xf32, #tpu.memory_space<vmem>>, vector<4x256xf32>
    tpu.vector_store %arg6[%c28, %c0_84], %202 {strides = array<i32>} : memref<36x256xf32, #tpu.memory_space<vmem>>, vector<4x256xf32>,
    %c239_i32 = arith.constant 239 : i32
    %204 = tpu.dynamic_rotate %2 by %c239_i32 dim 1 : vector<4x256xf32>, i32 -> vector<4x256xf32>
    %c1_i32_85 = arith.constant 1 : i32
    %205 = vector.broadcast %c1_i32_85 : i32 to vector<1x256xi32>
    %206 = arith.addi %3, %205 : vector<1x256xi32>
    %c0_i32_86 = arith.constant 0 : i32
    %207 = vector.broadcast %c0_i32_86 : i32 to vector<1x256xi32>
    %208 = arith.cmpi sge, %206, %207 : vector<1x256xi32>
    %c1_i32_87 = arith.constant 1 : i32
    %209 = vector.broadcast %c1_i32_87 : i32 to vector<1x256xi32>
    %210 = arith.addi %3, %209 : vector<1x256xi32>
    %c16_i32_88 = arith.constant 16 : i32
    %211 = vector.broadcast %c16_i32_88 : i32 to vector<1x256xi32>
    %212 = arith.cmpi slt, %210, %211 : vector<1x256xi32>
    %213 = arith.andi %208, %212 : vector<1x256xi1>
    %c1_i32_89 = arith.constant 1 : i32
    %214 = vector.broadcast %c1_i32_89 : i32 to vector<1x256xi32>
    %215 = arith.addi %4, %214 : vector<1x256xi32>
    %c0_i32_90 = arith.constant 0 : i32
    %216 = vector.broadcast %c0_i32_90 : i32 to vector<1x256xi32>
    %217 = arith.cmpi sge, %215, %216 : vector<1x256xi32>
    %218 = arith.andi %213, %217 : vector<1x256xi1>
    %c1_i32_91 = arith.constant 1 : i32
    %219 = vector.broadcast %c1_i32_91 : i32 to vector<1x256xi32>
    %220 = arith.addi %4, %219 : vector<1x256xi32>
    %c16_i32_92 = arith.constant 16 : i32
    %221 = vector.broadcast %c16_i32_92 : i32 to vector<1x256xi32>
    %222 = arith.cmpi slt, %220, %221 : vector<1x256xi32>
    %223 = arith.andi %218, %222 : vector<1x256xi1>
    %cst_93 = arith.constant 0.000000e+00 : f32
    %224 = vector.shape_cast %223 : vector<1x256xi1> to vector<1x256xi1>
    %225 = vector.broadcast %224 : vector<1x256xi1> to vector<4x256xi1>
    %226 = vector.broadcast %cst_93 : f32 to vector<4x256xf32>
    %227 = arith.select %225, %204, %226 : vector<4x256xi1>, vector<4x256xf32>
    %c32 = arith.constant 32 : index
    %c0_94 = arith.constant 0 : index
    %228 = vector.load %arg6[%c32, %c0_94] : memref<36x256xf32, #tpu.memory_space<vmem>>, vector<4x256xf32>
    tpu.vector_store %arg6[%c32, %c0_94], %227 {strides = array<i32>} : memref<36x256xf32, #tpu.memory_space<vmem>>, vector<4x256xf32>,
    %c0_95 = arith.constant 0 : index
    %c0_96 = arith.constant 0 : index
    %229 = vector.load %arg3[%c0_95, %c0_96] : memref<64x36xbf16, #tpu.memory_space<vmem>>, vector<64x36xbf16>
    %c0_97 = arith.constant 0 : index
    %c0_98 = arith.constant 0 : index
    %230 = vector.load %arg6[%c0_97, %c0_98] : memref<36x256xf32, #tpu.memory_space<vmem>>, vector<36x256xf32>
    %231 = arith.truncf %230 : vector<36x256xf32> to vector<36x256xbf16>
    %cst_99 = arith.constant dense<0.000000e+00> : vector<64x256xf32>
    %232 = tpu.matmul %229, %231, %cst_99 {dimension_numbers = #tpu.dot_dimension_numbers<[1], [0], [0], [1], [0, 0, 1, 1], [], []>} : vector<64x36xbf16>, vector<36x256xbf16>, vector<64x256xf32> -> vector<64x256xf32>
    %c0_100 = arith.constant 0 : index
    %c0_101 = arith.constant 0 : index
    %233 = vector.load %arg4[%c0_100, %c0_101] : memref<64x1xf32, #tpu.memory_space<vmem>>, vector<64x1xf32>
    %234 = vector.broadcast %233 : vector<64x1xf32> to vector<64x256xf32>
    %235 = arith.addf %232, %234 : vector<64x256xf32>
    %cst_102 = arith.constant 0.000000e+00 : f32
    %236 = vector.broadcast %cst_102 : f32 to vector<64x256xf32>
    %237 = arith.maximumf %235, %236 : vector<64x256xf32>
    %c0_103 = arith.constant 0 : index
    %c0_104 = arith.constant 0 : index
    %c0_105 = arith.constant 0 : index
    %238 = vector.load %arg5[%c0_103, %c0_104, %c0_105] : memref<1x64x256xf32, #tpu.memory_space<vmem>>, vector<1x64x256xf32>
    %239 = vector.shape_cast %238 : vector<1x64x256xf32> to vector<64x256xf32>
    %240 = vector.shape_cast %237 : vector<64x256xf32> to vector<1x64x256xf32>
    tpu.vector_store %arg5[%c0_103, %c0_104, %c0_105], %240 {strides = array<i32>} : memref<1x64x256xf32, #tpu.memory_space<vmem>>, vector<1x64x256xf32>,
    return
  }
  func.func @transform_0(%arg0: i32) -> (i32, i32, i32, i32) {
    %c0_i32 = arith.constant 0 : i32
    %c0_i32_0 = arith.constant 0 : i32
    %c0_i32_1 = arith.constant 0 : i32
    %c0_i32_2 = arith.constant 0 : i32
    return %arg0, %c0_i32, %c0_i32_0, %c0_i32_1 : i32, i32, i32, i32
  }
  func.func @transform_1(%arg0: i32) -> (i32, i32) {
    %c0_i32 = arith.constant 0 : i32
    %c0_i32_0 = arith.constant 0 : i32
    %c0_i32_1 = arith.constant 0 : i32
    return %c0_i32, %c0_i32_0 : i32, i32
  }
  func.func @transform_2(%arg0: i32) -> (i32, i32) {
    %c0_i32 = arith.constant 0 : i32
    %c0_i32_0 = arith.constant 0 : i32
    %c0_i32_1 = arith.constant 0 : i32
    return %c0_i32, %c0_i32_0 : i32, i32
  }
  func.func @transform_3(%arg0: i32) -> (i32, i32) {
    %c0_i32 = arith.constant 0 : i32
    %c0_i32_0 = arith.constant 0 : i32
    %c0_i32_1 = arith.constant 0 : i32
    return %c0_i32, %c0_i32_0 : i32, i32
  }
  func.func @transform_4(%arg0: i32) -> (i32, i32, i32) {
    %c0_i32 = arith.constant 0 : i32
    %c0_i32_0 = arith.constant 0 : i32
    %c0_i32_1 = arith.constant 0 : i32
    return %arg0, %c0_i32, %c0_i32_0 : i32, i32, i32
  }
}

</mosaic_0001>

<llo_original>
// kernel: tpu_custom_call.1
$region0: #{tpu_custom_call.1}
  #allocation0 [shape = 'u32[]', space=smem, size = 0x4, offset = 0x4, fixed_abs, tag = 'smem constant byte address 0x4 - core index']
  #allocation1 [shape = 'u32[72,128]{1,0:T(1,128)}', space=vmem, size = 0x9000, scoped, tag = 'internal scratch']
  #allocation2 [shape = 'f32[36,256]{1,0:T(8,128)}', space=vmem, size = 0xa000, scoped, tag = 'scratch operand']
  %s0 = inlined_call_operand.hbm [shape: f32[2,4,8,256], index: 0, kind: input, shape index: {}]
  %s1 = inlined_call_operand.vmem [shape: s32[2,256], index: 1, kind: input, shape index: {}]
  %s2 = inlined_call_operand.vmem [shape: bf16[64,36], index: 2, kind: input, shape index: {}]
  %s3 = inlined_call_operand.vmem [shape: f32[64,1], index: 3, kind: input, shape index: {}]
  %s4 = inlined_call_operand.hbm [shape: f32[2,64,256], index: 4, kind: output, shape index: {}]
  %s5 = sld [smem:[#allocation0]]
  $region53: #{tpu_custom_call.1} parent=0
    _
  %s7 = ssub.s32 1, %s5
  %s8 = scalar_select 0, %s7, %s5
  $region1: #{tpu_custom_call.1} parent=0
    #allocation3 [shape = 'u8[65536]{0}', space=vmem, size = 0x10000, scoped, tag = 'input window, operand 0']
    #allocation4 [shape = 's32[2]{0}', space=sflag, size = 0x8, scoped, tag = 'scoped memory for tpu_custom_call.1']
    #allocation5 [shape = 's32[2]{0}', space=sflag, size = 0x8, scoped, tag = 'scoped memory for tpu_custom_call.1']
    #allocation6 [shape = 'u8[131072]{0}', space=vmem, size = 0x20000, scoped, tag = 'output window, operand 0']
    %9 = vsyncpa [#allocation4], 0
    %s10 = scalar_lea.sflag [#allocation4], 1
    %11 = vsyncpa %s10, 0
    %12 = vsyncpa [#allocation5], 0
    %s13 = scalar_lea.sflag [#allocation5], 1
    %14 = vsyncpa %s13, 0
    loop: start=0, step=1, limit=4
    $region2: #{tpu_custom_call.1} parent=1 // loop_pre_header
      _
    $region3: #{tpu_custom_call.1} parent=1 // loop_header
      %s16 = sphi 0, %s20
      %p17 = scmp.ge.s32.totalorder %s16, 4
      %s26 = sphi 0, %s28
      %s29 = sphi 0, %s26
      %s30 = sphi 0, %s29
      %s46 = sphi 0, %s30
      %s50 = sphi 0, %s50
      %s52 = sphi 0, %s50
      %s53 = sphi 0, %s52
      %s67 = sphi 0, %s53
      %s71 = sphi 0, %s71
      %s73 = sphi 0, %s71
      %s74 = sphi 0, %s73
      %s88 = sphi 0, %s74
      %s92 = sphi 0, %s92
      %s94 = sphi 0, %s92
      %s95 = sphi 0, %s94
      %s109 = sphi 0, %s95
      %s115 = sphi 0, %s117
      %s118 = sphi 0, %s115
      %s119 = sphi 0, %s118
      %s135 = sphi 0, %s119
    $region4: #{tpu_custom_call.1} parent=1 // loop_header_branch
      %19 = sbr.rel (%p17) target = $region8
    $region5: #{tpu_custom_call.1} parent=1 // loop_body
      %s21 = ssub.s32 %s16, 1
      %s22 = ssub.s32 %s16, 2
      %s23 = sadd.s32 %s16, 1
      %s24 = ssub.s32 %s16, %s23
      %p25 = scmp.eq.s32.totalorder %s24, 0
      %s27 = sadd.s32 %s26, 1
      %s28 = scalar_select %p25, %s26, %s27
      %p31 = pneg %p25
      %p32 = scmp.eq.s32.totalorder %s16, 1
      %p33 = por %p31, %p32
      %p34 = scmp.ne.s32.totalorder %s26, %s29
      %p35 = scmp.eq.s32.totalorder %s16, 0
      %p36 = por %p34, %p35
      %p37 = scmp.ne.s32.totalorder %s26, %s29
      %p38 = scmp.eq.s32.totalorder %s21, 1
      %p39 = por %p37, %p38
      %p40 = scmp.ne.s32.totalorder %s29, %s30
      %p41 = scmp.eq.s32.totalorder %s21, 0
      %p42 = por %p40, %p41
      %p43 = scmp.ne.s32.totalorder %s29, %s30
      %p44 = scmp.eq.s32.totalorder %s22, 1
      %p45 = por %p43, %p44
      %p47 = scmp.ne.s32.totalorder %s30, %s46
      %p48 = scmp.eq.s32.totalorder %s22, 0
      %p49 = por %p47, %p48
      %s51 = sadd.s32 %s50, 1
      %p54 = scmp.eq.s32.totalorder %s16, 1
      %p55 = scmp.ne.s32.totalorder %s50, %s52
      %p56 = scmp.eq.s32.totalorder %s16, 0
      %p57 = por %p55, %p56
      %p58 = scmp.ne.s32.totalorder %s50, %s52
      %p59 = scmp.eq.s32.totalorder %s21, 1
      %p60 = por %p58, %p59
      %p61 = scmp.ne.s32.totalorder %s52, %s53
      %p62 = scmp.eq.s32.totalorder %s21, 0
      %p63 = por %p61, %p62
      %p64 = scmp.ne.s32.totalorder %s52, %s53
      %p65 = scmp.eq.s32.totalorder %s22, 1
      %p66 = por %p64, %p65
      %p68 = scmp.ne.s32.totalorder %s53, %s67
      %p69 = scmp.eq.s32.totalorder %s22, 0
      %p70 = por %p68, %p69
      %s72 = sadd.s32 %s71, 1
      %p75 = scmp.eq.s32.totalorder %s16, 1
      %p76 = scmp.ne.s32.totalorder %s71, %s73
      %p77 = scmp.eq.s32.totalorder %s16, 0
      %p78 = por %p76, %p77
      %p79 = scmp.ne.s32.totalorder %s71, %s73
      %p80 = scmp.eq.s32.totalorder %s21, 1
      %p81 = por %p79, %p80
      %p82 = scmp.ne.s32.totalorder %s73, %s74
      %p83 = scmp.eq.s32.totalorder %s21, 0
      %p84 = por %p82, %p83
      %p85 = scmp.ne.s32.totalorder %s73, %s74
      %p86 = scmp.eq.s32.totalorder %s22, 1
      %p87 = por %p85, %p86
      %p89 = scmp.ne.s32.totalorder %s74, %s88
      %p90 = scmp.eq.s32.totalorder %s22, 0
      %p91 = por %p89, %p90
      %s93 = sadd.s32 %s92, 1
      %p96 = scmp.eq.s32.totalorder %s16, 1
      %p97 = scmp.ne.s32.totalorder %s92, %s94
      %p98 = scmp.eq.s32.totalorder %s16, 0
      %p99 = por %p97, %p98
      %p100 = scmp.ne.s32.totalorder %s92, %s94
      %p101 = scmp.eq.s32.totalorder %s21, 1
      %p102 = por %p100, %p101
      %p103 = scmp.ne.s32.totalorder %s94, %s95
      %p104 = scmp.eq.s32.totalorder %s21, 0
      %p105 = por %p103, %p104
      %p106 = scmp.ne.s32.totalorder %s94, %s95
      %p107 = scmp.eq.s32.totalorder %s22, 1
      %p108 = por %p106, %p107
      %p110 = scmp.ne.s32.totalorder %s95, %s109
      %p111 = scmp.eq.s32.totalorder %s22, 0
      %p112 = por %p110, %p111
      %s113 = ssub.s32 %s16, %s23
      %p114 = scmp.eq.s32.totalorder %s113, 0
      %s116 = sadd.s32 %s115, 1
      %s117 = scalar_select %p114, %s115, %s116
      %p120 = pneg %p114
      %p121 = scmp.eq.s32.totalorder %s16, 1
      %p122 = por %p120, %p121
      %p123 = scmp.ne.s32.totalorder %s115, %s118
      %p124 = scmp.eq.s32.totalorder %s16, 0
      %p125 = por %p123, %p124
      %p126 = scmp.ne.s32.totalorder %s115, %s118
      %p127 = scmp.eq.s32.totalorder %s21, 1
      %p128 = por %p126, %p127
      %p129 = scmp.ne.s32.totalorder %s118, %s119
      %p130 = scmp.eq.s32.totalorder %s21, 0
      %p131 = por %p129, %p130
      %p132 = scmp.ne.s32.totalorder %s118, %s119
      %p133 = scmp.eq.s32.totalorder %s22, 1
      %p134 = por %p132, %p133
      %p136 = scmp.ne.s32.totalorder %s119, %s135
      %p137 = scmp.eq.s32.totalorder %s22, 0
      %p138 = por %p136, %p137
      %p139 = scmp.le.s32.totalorder 1, %s16
      %p140 = scmp.lt.s32.totalorder %s16, 3
      %p141 = pnand %p139, %p140
      %p142 = pneg %p141
      // Predicated region
      $region9: #{tpu_custom_call.1} parent=5 // pred_check
        _
      $region10: #{tpu_custom_call.1} parent=5 // pred_check_branch
        %144 = sbr.rel (%p141) target = $region12
      $region11: #{tpu_custom_call.1} parent=5 // pred_region
        %s145 = ssub.s32 %s16, 1
        // Predicated region
        $region13: #{tpu_custom_call.1} parent=11 // pred_check
          %p146 = pneg %p63
        $region14: #{tpu_custom_call.1} parent=11 // pred_check_branch
          %148 = sbr.rel (%p146) target = $region16
        $region15: #{tpu_custom_call.1} parent=11 // pred_region
          _
        $region16: #{tpu_custom_call.1} parent=11 // pred_fallthru
          _
        // Predicated region
        $region17: #{tpu_custom_call.1} parent=11 // pred_check
          %p149 = pneg %p84
        $region18: #{tpu_custom_call.1} parent=11 // pred_check_branch
          %151 = sbr.rel (%p149) target = $region20
        $region19: #{tpu_custom_call.1} parent=11 // pred_region
          _
        $region20: #{tpu_custom_call.1} parent=11 // pred_fallthru
          _
        // Predicated region
        $region21: #{tpu_custom_call.1} parent=11 // pred_check
          %p152 = pneg %p105
        $region22: #{tpu_custom_call.1} parent=11 // pred_check_branch
          %154 = sbr.rel (%p152) target = $region24
        $region23: #{tpu_custom_call.1} parent=11 // pred_region
          _
        $region24: #{tpu_custom_call.1} parent=11 // pred_fallthru
          _
      $region12: #{tpu_custom_call.1} parent=5 // pred_fallthru
        _
      %p155 = scmp.lt.s32.totalorder %s16, 2
      // Predicated region
      $region25: #{tpu_custom_call.1} parent=5 // pred_check
        %p156 = pneg %p155
      $region26: #{tpu_custom_call.1} parent=5 // pred_check_branch
        %158 = sbr.rel (%p156) target = $region28
      $region27: #{tpu_custom_call.1} parent=5 // pred_region
        // Predicated region
        $region29: #{tpu_custom_call.1} parent=27 // pred_check
          %p159 = pneg %p36
        $region30: #{tpu_custom_call.1} parent=27 // pred_check_branch
          %161 = sbr.rel (%p159) target = $region32
        $region31: #{tpu_custom_call.1} parent=27 // pred_region
          %s162 = sand.u32 %s26, 1
          %s163 = scalar_lea.sflag [#allocation4], %s162
          %s164 = sand.u32 %s26, 1
          %s165 = smul.addr %s164, 64
          %s166 = scalar_lea.vmem [#allocation3], %s165
          %168 = vsyncadd %s163, 0
          %s169 = smul.addr %s16, 8
          %s170 = smul.addr %s169, 8
          %s171 = scalar_lea.hbm %s0, %s170
          %s172 = sshll.u32 %s171, 4
          %s173 = int_to_ptr.hbm [resolvable:$true] %s172
          %s174 = sshll.u32 %s166, 4
          %s175 = int_to_ptr.vmem [resolvable:$true] %s174
          %180 = dma.hbm_to_vmem [thread:$0]  %s173, 1024, %s175, %s163, 256, 256, 16
        $region32: #{tpu_custom_call.1} parent=27 // pred_fallthru
          _
      $region28: #{tpu_custom_call.1} parent=5 // pred_fallthru
        _
      %p181 = scmp.le.s32.totalorder 1, %s16
      %p182 = scmp.lt.s32.totalorder %s16, 3
      %p183 = pnand %p181, %p182
      %p184 = pneg %p183
      // Predicated region
      $region33: #{tpu_custom_call.1} parent=5 // pred_check
        _
      $region34: #{tpu_custom_call.1} parent=5 // pred_check_branch
        %186 = sbr.rel (%p183) target = $region36
      $region35: #{tpu_custom_call.1} parent=5 // pred_region
        %s187 = ssub.s32 %s16, 1
        %s188 = sand.u32 %s29, 1
        %s189 = scalar_lea.sflag [#allocation4], %s188
        %s190 = sand.u32 %s29, 1
        %s191 = smul.addr %s190, 64
        %s192 = scalar_lea.vmem [#allocation3], %s191
        // Predicated region
        $region37: #{tpu_custom_call.1} parent=35 // pred_check
          %p193 = pneg %p42
        $region38: #{tpu_custom_call.1} parent=35 // pred_check_branch
          %195 = sbr.rel (%p193) target = $region40
        $region39: #{tpu_custom_call.1} parent=35 // pred_region
          %197 = dma.done %s189, 1024
        $region40: #{tpu_custom_call.1} parent=35 // pred_fallthru
          _
        %s198 = sand.u32 %s29, 1
        %s199 = scalar_lea.sflag [#allocation4], %s198
        %s200 = sand.u32 %s29, 1
        %s201 = smul.addr %s200, 64
        %s202 = scalar_lea.vmem [#allocation3], %s201
        %p203 = pneg %p42
        %p204 = pneg %p39
        %p205 = pneg %p63
        %p206 = pneg %p60
        %p207 = pneg %p84
        %p208 = pneg %p81
        %p209 = pneg %p105
        %p210 = pneg %p102
        %p211 = pneg %p131
        %p212 = pneg %p128
        %s213 = sand.u32 %s118, 1
        %s214 = scalar_lea.sflag [#allocation5], %s213
        %s215 = sand.u32 %s118, 1
        %s216 = smul.addr %s215, 128
        %s217 = scalar_lea.vmem [#allocation6], %s216
        %v219 = vld [vmem:[%s192] sm:$0xff]
        %v220 = vld [vmem:[%s192 + $0x8] sm:$0xff]
        %v221 = vld [vmem:[%s192 + $0x10] sm:$0xff]
        %v222 = vld [vmem:[%s192 + $0x18] sm:$0xff]
        %v223 = vld [vmem:[%s192 + $0x20] sm:$0xff]
        %v224 = vld [vmem:[%s192 + $0x28] sm:$0xff]
        %v225 = vld [vmem:[%s192 + $0x30] sm:$0xff]
        %v226 = vld [vmem:[%s192 + $0x38] sm:$0xff]
        %v227 = vrot.slane %v219, 4
        %v228 = vadd.f32 %v219, %v227
        %v229 = vrot.slane %v228, 2
        %v230 = vadd.f32 %v228, %v229
        %v231 = vrot.slane %v230, 1
        %v232 = vadd.f32 %v230, %v231
        %v233 = vrot.slane %v220, 4
        %v234 = vadd.f32 %v220, %v233
        %v235 = vrot.slane %v234, 2
        %v236 = vadd.f32 %v234, %v235
        %v237 = vrot.slane %v236, 1
        %v238 = vadd.f32 %v236, %v237
        %v239 = vrot.slane %v221, 4
        %v240 = vadd.f32 %v221, %v239
        %v241 = vrot.slane %v240, 2
        %v242 = vadd.f32 %v240, %v241
        %v243 = vrot.slane %v242, 1
        %v244 = vadd.f32 %v242, %v243
        %v245 = vrot.slane %v222, 4
        %v246 = vadd.f32 %v222, %v245
        %v247 = vrot.slane %v246, 2
        %v248 = vadd.f32 %v246, %v247
        %v249 = vrot.slane %v248, 1
        %v250 = vadd.f32 %v248, %v249
        %v251 = vrot.slane %v223, 4
        %v252 = vadd.f32 %v223, %v251
        %v253 = vrot.slane %v252, 2
        %v254 = vadd.f32 %v252, %v253
        %v255 = vrot.slane %v254, 1
        %v256 = vadd.f32 %v254, %v255
        %v257 = vrot.slane %v224, 4
        %v258 = vadd.f32 %v224, %v257
        %v259 = vrot.slane %v258, 2
        %v260 = vadd.f32 %v258, %v259
        %v261 = vrot.slane %v260, 1
        %v262 = vadd.f32 %v260, %v261
        %v263 = vrot.slane %v225, 4
        %v264 = vadd.f32 %v225, %v263
        %v265 = vrot.slane %v264, 2
        %v266 = vadd.f32 %v264, %v265
        %v267 = vrot.slane %v266, 1
        %v268 = vadd.f32 %v266, %v267
        %v269 = vrot.slane %v226, 4
        %v270 = vadd.f32 %v226, %v269
        %v271 = vrot.slane %v270, 2
        %v272 = vadd.f32 %v270, %v271
        %v273 = vrot.slane %v272, 1
        %v274 = vadd.f32 %v272, %v273
        %v275 = vld [vmem:[%s1] ss:$2 sm:$0x3]
        %s276 = scalar_lea.vmem %s1, 1
        %v277 = vld [vmem:[%s276] ss:$2 sm:$0x3]
        %vm286 = vcmask 1041409
        %v287 = vsel %vm286, %v244, %v232
        %vm288 = vcmask 1042434
        %v289 = vsel %vm288, %v256, %v287
        %vm290 = vcmask 1043459
        %v291 = vsel %vm290, %v268, %v289
        %v292 = vsel %vm286, %v250, %v238
        %v293 = vsel %vm288, %v262, %v292
        %v294 = vsel %vm290, %v274, %v293
        %297 = vrot.lane.b32.xlu0 %v291, 17
        %v298 = vpop.permute.xlu0 %297
        %299 = vrot.lane.b32.xlu0 %v294, 17
        %v300 = vpop.permute.xlu0 %299
        %v301 = vlaneseq
        %v302 = vand.u32 %v301, 127
        %vm303 = vcmp.lt.s32.totalorder %v302, 17
        %v304 = vsel %vm303, %v298, %v300
        %v305 = vsel %vm303, %v300, %v298
        %v306 = vadd.s32 %v275, 4294967295
        %vm307 = vcmp.ge.s32.totalorder %v306, 0
        %vm308 = vcmp.lt.s32.totalorder %v306, 16
        %vm309 = vmand %vm307, %vm308
        %v310 = vadd.s32 %v277, 4294967295
        %vm311 = vcmp.ge.s32.totalorder %v310, 0
        %vm312 = vmand %vm309, %vm311
        %vm313 = vcmp.lt.s32.totalorder %v310, 16
        %vm314 = vmand %vm312, %vm313
        %v315 = vsel %vm314, 1, 0
        %v316 = vperm.slane %v315, 0
        %v317 = vperm.slane %v315, 1
        %vm318 = vcmp.eq.s32.totalorder %v316, 1
        %vm319 = vcmp.eq.s32.totalorder %v317, 1
        %v320 = vsel %vm318, %v305, 0.0
        %v321 = vsel %vm319, %v304, 0.0
        %322 = vst [vmem:[#allocation2] sm:$0xf] %v320
        %323 = vst [vmem:[#allocation2 + $0x8] sm:$0xf] %v321
        %324 = vrot.lane.b32.xlu0 %v291, 16
        %v325 = vpop.permute.xlu0 %324
        %326 = vrot.lane.b32.xlu0 %v294, 16
        %v327 = vpop.permute.xlu0 %326
        %vm328 = vcmp.lt.s32.totalorder %v302, 16
        %v329 = vsel %vm328, %v325, %v327
        %v330 = vsel %vm328, %v327, %v325
        %vm331 = vcmp.ge.s32.totalorder %v277, 0
        %vm332 = vmand %vm309, %vm331
        %vm333 = vcmp.lt.s32.totalorder %v277, 16
        %vm334 = vmand %vm332, %vm333
        %v335 = vsel %vm334, 1, 0
        %v336 = vperm.slane %v335, 0
        %v337 = vperm.slane %v335, 1
        %vm338 = vcmp.eq.s32.totalorder %v336, 1
        %vm339 = vcmp.eq.s32.totalorder %v337, 1
        %v340 = vsel %vm338, %v330, 0.0
        %v341 = vsel %vm339, %v329, 0.0
        %v344 = vrot.slane %v340, 4
        %v345 = vrot.slane %v341, 4
        %348 = vst [vmem:[#allocation2] sm:$0xf0] %v344
        %349 = vst [vmem:[#allocation2 + $0x8] sm:$0xf0] %v345
        %350 = vrot.lane.b32.xlu0 %v291, 15
        %v351 = vpop.permute.xlu0 %350
        %352 = vrot.lane.b32.xlu0 %v294, 15
        %v353 = vpop.permute.xlu0 %352
        %vm354 = vcmp.lt.s32.totalorder %v302, 15
        %v355 = vsel %vm354, %v351, %v353
        %v356 = vsel %vm354, %v353, %v351
        %v357 = vadd.s32 %v277, 1
        %vm358 = vcmp.ge.s32.totalorder %v357, 0
        %vm359 = vmand %vm309, %vm358
        %vm360 = vcmp.lt.s32.totalorder %v357, 16
        %vm361 = vmand %vm359, %vm360
        %v362 = vsel %vm361, 1, 0
        %v363 = vperm.slane %v362, 0
        %v364 = vperm.slane %v362, 1
        %vm365 = vcmp.eq.s32.totalorder %v363, 1
        %vm366 = vcmp.eq.s32.totalorder %v364, 1
        %v367 = vsel %vm365, %v356, 0.0
        %v368 = vsel %vm366, %v355, 0.0
        %369 = vst [vmem:[#allocation2 + $0x10] sm:$0xf] %v367
        %370 = vst [vmem:[#allocation2 + $0x18] sm:$0xf] %v368
        %371 = vrot.lane.b32.xlu0 %v291, 1
        %v372 = vpop.permute.xlu0 %371
        %373 = vrot.lane.b32.xlu0 %v294, 1
        %v374 = vpop.permute.xlu0 %373
        %vm375 = vcmp.lt.s32.totalorder %v302, 1
        %v376 = vsel %vm375, %v372, %v374
        %v377 = vsel %vm375, %v374, %v372
        %vm378 = vcmp.ge.s32.totalorder %v275, 0
        %vm379 = vcmp.lt.s32.totalorder %v275, 16
        %vm380 = vmand %vm378, %vm379
        %vm381 = vmand %vm380, %vm311
        %vm382 = vmand %vm381, %vm313
        %v383 = vsel %vm382, 1, 0
        %v384 = vperm.slane %v383, 0
        %v385 = vperm.slane %v383, 1
        %vm386 = vcmp.eq.s32.totalorder %v384, 1
        %vm387 = vcmp.eq.s32.totalorder %v385, 1
        %v388 = vsel %vm386, %v377, 0.0
        %v389 = vsel %vm387, %v376, 0.0
        %v392 = vrot.slane %v388, 4
        %v393 = vrot.slane %v389, 4
        %396 = vst [vmem:[#allocation2 + $0x10] sm:$0xf0] %v392
        %397 = vst [vmem:[#allocation2 + $0x18] sm:$0xf0] %v393
        %vm398 = vmand %vm380, %vm331
        %vm399 = vmand %vm398, %vm333
        %v400 = vsel %vm399, 1, 0
        %v401 = vperm.slane %v400, 0
        %v402 = vperm.slane %v400, 1
        %vm403 = vcmp.eq.s32.totalorder %v401, 1
        %vm404 = vcmp.eq.s32.totalorder %v402, 1
        %v405 = vsel %vm403, %v291, 0.0
        %v406 = vsel %vm404, %v294, 0.0
        %407 = vst [vmem:[#allocation2 + $0x20] sm:$0xf] %v405
        %408 = vst [vmem:[#allocation2 + $0x28] sm:$0xf] %v406
        %409 = vrot.lane.b32.xlu0 %v291, 127
        %v410 = vpop.permute.xlu0 %409
        %411 = vrot.lane.b32.xlu0 %v294, 127
        %v412 = vpop.permute.xlu0 %411
        %vm413 = vcmp.lt.s32.totalorder %v302, 127
        %v414 = vsel %vm413, %v410, %v412
        %v415 = vsel %vm413, %v412, %v410
        %vm416 = vmand %vm380, %vm358
        %vm417 = vmand %vm416, %vm360
        %v418 = vsel %vm417, 1, 0
        %v419 = vperm.slane %v418, 0
        %v420 = vperm.slane %v418, 1
        %vm421 = vcmp.eq.s32.totalorder %v419, 1
        %vm422 = vcmp.eq.s32.totalorder %v420, 1
        %v423 = vsel %vm421, %v414, 0.0
        %v424 = vsel %vm422, %v415, 0.0
        %v427 = vrot.slane %v423, 4
        %v428 = vrot.slane %v424, 4
        %431 = vst [vmem:[#allocation2 + $0x20] sm:$0xf0] %v427
        %432 = vst [vmem:[#allocation2 + $0x28] sm:$0xf0] %v428
        %433 = vrot.lane.b32.xlu0 %v291, 113
        %v434 = vpop.permute.xlu0 %433
        %435 = vrot.lane.b32.xlu0 %v294, 113
        %v436 = vpop.permute.xlu0 %435
        %vm437 = vcmp.lt.s32.totalorder %v302, 113
        %v438 = vsel %vm437, %v434, %v436
        %v439 = vsel %vm437, %v436, %v434
        %v440 = vadd.s32 %v275, 1
        %vm441 = vcmp.ge.s32.totalorder %v440, 0
        %vm442 = vcmp.lt.s32.totalorder %v440, 16
        %vm443 = vmand %vm441, %vm442
        %vm444 = vmand %vm443, %vm311
        %vm445 = vmand %vm444, %vm313
        %v446 = vsel %vm445, 1, 0
        %v447 = vperm.slane %v446, 0
        %v448 = vperm.slane %v446, 1
        %vm449 = vcmp.eq.s32.totalorder %v447, 1
        %vm450 = vcmp.eq.s32.totalorder %v448, 1
        %v451 = vsel %vm449, %v438, 0.0
        %v452 = vsel %vm450, %v439, 0.0
        %453 = vst [vmem:[#allocation2 + $0x30] sm:$0xf] %v451
        %454 = vst [vmem:[#allocation2 + $0x38] sm:$0xf] %v452
        %455 = vrot.lane.b32.xlu0 %v291, 112
        %v456 = vpop.permute.xlu0 %455
        %457 = vrot.lane.b32.xlu0 %v294, 112
        %v458 = vpop.permute.xlu0 %457
        %vm459 = vcmp.lt.s32.totalorder %v302, 112
        %v460 = vsel %vm459, %v456, %v458
        %v461 = vsel %vm459, %v458, %v456
        %vm462 = vmand %vm443, %vm331
        %vm463 = vmand %vm462, %vm333
        %v464 = vsel %vm463, 1, 0
        %v465 = vperm.slane %v464, 0
        %v466 = vperm.slane %v464, 1
        %vm467 = vcmp.eq.s32.totalorder %v465, 1
        %vm468 = vcmp.eq.s32.totalorder %v466, 1
        %v469 = vsel %vm467, %v460, 0.0
        %v470 = vsel %vm468, %v461, 0.0
        %v473 = vrot.slane %v469, 4
        %v474 = vrot.slane %v470, 4
        %477 = vst [vmem:[#allocation2 + $0x30] sm:$0xf0] %v473
        %478 = vst [vmem:[#allocation2 + $0x38] sm:$0xf0] %v474
        %479 = vrot.lane.b32.xlu0 %v291, 111
        %v480 = vpop.permute.xlu0 %479
        %481 = vrot.lane.b32.xlu0 %v294, 111
        %v482 = vpop.permute.xlu0 %481
        %vm483 = vcmp.lt.s32.totalorder %v302, 111
        %v484 = vsel %vm483, %v480, %v482
        %v485 = vsel %vm483, %v482, %v480
        %vm486 = vmand %vm443, %vm358
        %vm487 = vmand %vm486, %vm360
        %v488 = vsel %vm487, 1, 0
        %v489 = vperm.slane %v488, 0
        %v490 = vperm.slane %v488, 1
        %vm491 = vcmp.eq.s32.totalorder %v489, 1
        %vm492 = vcmp.eq.s32.totalorder %v490, 1
        %v493 = vsel %vm491, %v484, 0.0
        %v494 = vsel %vm492, %v485, 0.0
        %495 = vst [vmem:[#allocation2 + $0x40] sm:$0xf] %v493
        %496 = vst [vmem:[#allocation2 + $0x48] sm:$0xf] %v494
        %v497 = vld [vmem:[%s2] sm:$0xf]
        %v498 = vld [vmem:[%s2 + $0x4] sm:$0xf]
        %v499 = vld [vmem:[%s2 + $0x8] sm:$0xf]
        %v500 = vld [vmem:[%s2 + $0xc] sm:$0xf]
        %v501 = vld [vmem:[%s2 + $0x10] sm:$0xf]
        %v502 = vld [vmem:[%s2 + $0x14] sm:$0xf]
        %v503 = vld [vmem:[%s2 + $0x18] sm:$0xf]
        %v504 = vld [vmem:[%s2 + $0x1c] sm:$0xf]
        %v505 = vld [vmem:[#allocation2] sm:$0xff]
        %v506 = vld [vmem:[#allocation2 + $0x8] sm:$0xff]
        %v507 = vld [vmem:[#allocation2 + $0x10] sm:$0xff]
        %v508 = vld [vmem:[#allocation2 + $0x18] sm:$0xff]
        %v509 = vld [vmem:[#allocation2 + $0x20] sm:$0xff]
        %v510 = vld [vmem:[#allocation2 + $0x28] sm:$0xff]
        %v511 = vld [vmem:[#allocation2 + $0x30] sm:$0xff]
        %v512 = vld [vmem:[#allocation2 + $0x38] sm:$0xff]
        %v513 = vld [vmem:[#allocation2 + $0x40] sm:$0xf]
        %v514 = vld [vmem:[#allocation2 + $0x48] sm:$0xf]
        %v515 = vpack.c.bf16 %v507, %v505
        %v516 = vpack.c.bf16 %v508, %v506
        %v517 = vpack.c.bf16 %v511, %v509
        %v518 = vpack.c.bf16 %v512, %v510
        %v519 = vpack.c.bf16 %v513, %v513
        %v520 = vpack.c.bf16 %v514, %v514
        %v521 = vld [vmem:[%s3] sm:$0xff]
        %v522 = vld [vmem:[%s3 + $0x8] sm:$0xff]
        %v523 = vld [vmem:[%s3 + $0x10] sm:$0xff]
        %v524 = vld [vmem:[%s3 + $0x18] sm:$0xff]
        %v525 = vld [vmem:[%s3 + $0x20] sm:$0xff]
        %v526 = vld [vmem:[%s3 + $0x28] sm:$0xff]
        %v527 = vld [vmem:[%s3 + $0x30] sm:$0xff]
        %v528 = vld [vmem:[%s3 + $0x38] sm:$0xff]
        %530 = vset.pattern.permute.xlu0 0
        %531 = vperm.xlu0 %530, %v521
        %v532 = vpop.permute.xlu0 %531
        %535 = vset.pattern.permute.xlu0 0
        %536 = vperm.xlu0 %535, %v522
        %v537 = vpop.permute.xlu0 %536
        %540 = vset.pattern.permute.xlu0 0
        %541 = vperm.xlu0 %540, %v523
        %v542 = vpop.permute.xlu0 %541
        %545 = vset.pattern.permute.xlu0 0
        %546 = vperm.xlu0 %545, %v524
        %v547 = vpop.permute.xlu0 %546
        %550 = vset.pattern.permute.xlu0 0
        %551 = vperm.xlu0 %550, %v525
        %v552 = vpop.permute.xlu0 %551
        %555 = vset.pattern.permute.xlu0 0
        %556 = vperm.xlu0 %555, %v526
        %v557 = vpop.permute.xlu0 %556
        %560 = vset.pattern.permute.xlu0 0
        %561 = vperm.xlu0 %560, %v527
        %v562 = vpop.permute.xlu0 %561
        %565 = vset.pattern.permute.xlu0 0
        %566 = vperm.xlu0 %565, %v528
        %v567 = vpop.permute.xlu0 %566
        %v577 = vunpack.c.l.b16 %v497
        %v578 = vunpack.c.l.b16 %v498
        %v579 = vunpack.c.l.b16 %v499
        %v580 = vunpack.c.l.b16 %v500
        %v581 = vunpack.c.l.b16 %v501
        %v582 = vunpack.c.l.b16 %v502
        %v583 = vunpack.c.l.b16 %v503
        %v584 = vunpack.c.l.b16 %v504
        %v585 = vpack.c.b16 %v578, %v577
        %v586 = vpack.c.b16 %v580, %v579
        %v587 = vpack.c.b16 %v582, %v581
        %v588 = vpack.c.b16 %v584, %v583
        %vm589 = vcmask 293888
        %v591 = vsel %vm589, %v585, 0
        %v594 = vsel %vm589, %v586, 0
        %v597 = vsel %vm589, %v587, 0
        %v600 = vsel %vm589, %v588, 0
        %vm602 = vcmask 1041408
        %v604 = vsel %vm602, %v519, 0
        %v607 = vsel %vm602, %v520, 0
        %609 = vmatpush.bf16.msra.mxu0 0
        %610 = vmatpush.bf16.msra.mxu0 0
        %611 = vmatpush.bf16.msra.mxu0 0
        %612 = vmatpush.bf16.msra.mxu0 0
        %613 = vmatpush.bf16.msra.mxu0 0
        %614 = vmatpush.bf16.msra.mxu0 %v604
        %615 = vmatpush.bf16.msra.mxu0 %v517
        %616 = vmatpush.bf16.msra.mxu0 %v515
        %617 = vmatmul.bf16.gmra.mxu0 %v591
        %v618 = vpop.f32.mrf.mxu0
        %v619 = vadd.f32 %v532, %v618
        %v620 = vpop.f32.mrf.mxu0
        %v621 = vadd.f32 %v537, %v620
        %622 = vmatmul.bf16.gmra.mxu0 %v594
        %v623 = vpop.f32.mrf.mxu0
        %v624 = vadd.f32 %v542, %v623
        %v625 = vpop.f32.mrf.mxu0
        %v626 = vadd.f32 %v547, %v625
        %627 = vmatmul.bf16.gmra.mxu0 %v597
        %v628 = vpop.f32.mrf.mxu0
        %v629 = vadd.f32 %v552, %v628
        %v630 = vpop.f32.mrf.mxu0
        %v631 = vadd.f32 %v557, %v630
        %632 = vmatmul.bf16.gmra.mxu0 %v600
        %v633 = vpop.f32.mrf.mxu0
        %v634 = vadd.f32 %v562, %v633
        %v635 = vpop.f32.mrf.mxu0
        %v636 = vadd.f32 %v567, %v635
        %637 = vdwg.mxu0
        %638 = vmatpush.bf16.msra.mxu0 0
        %639 = vmatpush.bf16.msra.mxu0 0
        %640 = vmatpush.bf16.msra.mxu0 0
        %641 = vmatpush.bf16.msra.mxu0 0
        %642 = vmatpush.bf16.msra.mxu0 0
        %643 = vmatpush.bf16.msra.mxu0 %v607
        %644 = vmatpush.bf16.msra.mxu0 %v518
        %645 = vmatpush.bf16.msra.mxu0 %v516
        %646 = vmatmul.bf16.gmra.mxu0 %v591
        %v647 = vpop.f32.mrf.mxu0
        %v648 = vadd.f32 %v532, %v647
        %v649 = vpop.f32.mrf.mxu0
        %v650 = vadd.f32 %v537, %v649
        %651 = vmatmul.bf16.gmra.mxu0 %v594
        %v652 = vpop.f32.mrf.mxu0
        %v653 = vadd.f32 %v542, %v652
        %v654 = vpop.f32.mrf.mxu0
        %v655 = vadd.f32 %v547, %v654
        %656 = vmatmul.bf16.gmra.mxu0 %v597
        %v657 = vpop.f32.mrf.mxu0
        %v658 = vadd.f32 %v552, %v657
        %v659 = vpop.f32.mrf.mxu0
        %v660 = vadd.f32 %v557, %v659
        %661 = vmatmul.bf16.gmra.mxu0 %v600
        %v662 = vpop.f32.mrf.mxu0
        %v663 = vadd.f32 %v562, %v662
        %v664 = vpop.f32.mrf.mxu0
        %v665 = vadd.f32 %v567, %v664
        %666 = vdwg.mxu0
        %v667 = vmax.f32 %v619, 0.0
        %v668 = vmax.f32 %v648, 0.0
        %v669 = vmax.f32 %v621, 0.0
        %v670 = vmax.f32 %v650, 0.0
        %v671 = vmax.f32 %v624, 0.0
        %v672 = vmax.f32 %v653, 0.0
        %v673 = vmax.f32 %v626, 0.0
        %v674 = vmax.f32 %v655, 0.0
        %v675 = vmax.f32 %v629, 0.0
        %v676 = vmax.f32 %v658, 0.0
        %v677 = vmax.f32 %v631, 0.0
        %v678 = vmax.f32 %v660, 0.0
        %v679 = vmax.f32 %v634, 0.0
        %v680 = vmax.f32 %v663, 0.0
        %v681 = vmax.f32 %v636, 0.0
        %v682 = vmax.f32 %v665, 0.0
        %683 = vst [vmem:[%s217] sm:$0xff] %v667
        %684 = vst [vmem:[%s217 + $0x8] sm:$0xff] %v668
        %685 = vst [vmem:[%s217 + $0x10] sm:$0xff] %v669
        %686 = vst [vmem:[%s217 + $0x18] sm:$0xff] %v670
        %687 = vst [vmem:[%s217 + $0x20] sm:$0xff] %v671
        %688 = vst [vmem:[%s217 + $0x28] sm:$0xff] %v672
        %689 = vst [vmem:[%s217 + $0x30] sm:$0xff] %v673
        %690 = vst [vmem:[%s217 + $0x38] sm:$0xff] %v674
        %691 = vst [vmem:[%s217 + $0x40] sm:$0xff] %v675
        %692 = vst [vmem:[%s217 + $0x48] sm:$0xff] %v676
        %693 = vst [vmem:[%s217 + $0x50] sm:$0xff] %v677
        %694 = vst [vmem:[%s217 + $0x58] sm:$0xff] %v678
        %695 = vst [vmem:[%s217 + $0x60] sm:$0xff] %v679
        %696 = vst [vmem:[%s217 + $0x68] sm:$0xff] %v680
        %697 = vst [vmem:[%s217 + $0x70] sm:$0xff] %v681
        %698 = vst [vmem:[%s217 + $0x78] sm:$0xff] %v682
        %s699 = sand.u32 %s118, 1
        %s700 = scalar_lea.sflag [#allocation5], %s699
        %s701 = sand.u32 %s118, 1
        %s702 = smul.addr %s701, 128
        %s703 = scalar_lea.vmem [#allocation6], %s702
        // Predicated region
        $region41: #{tpu_custom_call.1} parent=35 // pred_check
          %p704 = pneg %p128
        $region42: #{tpu_custom_call.1} parent=35 // pred_check_branch
          %706 = sbr.rel (%p704) target = $region44
        $region43: #{tpu_custom_call.1} parent=35 // pred_region
          %708 = vsyncadd %s700, 0
          %s709 = smul.addr %s21, 16
          %s710 = smul.addr %s709, 8
          %s711 = scalar_lea.hbm %s4, %s710
          %s712 = sshll.u32 %s703, 4
          %s713 = int_to_ptr.vmem [resolvable:$true] %s712
          %s714 = sshll.u32 %s711, 4
          %s715 = int_to_ptr.hbm [resolvable:$true] %s714
          %720 = dma.vmem_to_hbm [thread:$0]  %s713, 2048, %s715, %s700, 256, 256, 16
        $region44: #{tpu_custom_call.1} parent=35 // pred_fallthru
          _
      $region36: #{tpu_custom_call.1} parent=5 // pred_fallthru
        _
      %p721 = scmp.le.s32.totalorder 2, %s16
      // Predicated region
      $region45: #{tpu_custom_call.1} parent=5 // pred_check
        %p722 = pneg %p721
      $region46: #{tpu_custom_call.1} parent=5 // pred_check_branch
        %724 = sbr.rel (%p722) target = $region48
      $region47: #{tpu_custom_call.1} parent=5 // pred_region
        %s725 = ssub.s32 %s16, 2
        // Predicated region
        $region49: #{tpu_custom_call.1} parent=47 // pred_check
          %p726 = pneg %p134
        $region50: #{tpu_custom_call.1} parent=47 // pred_check_branch
          %728 = sbr.rel (%p726) target = $region52
        $region51: #{tpu_custom_call.1} parent=47 // pred_region
          %s729 = sand.u32 %s119, 1
          %s730 = scalar_lea.sflag [#allocation5], %s729
          %s731 = sand.u32 %s119, 1
          %s732 = smul.addr %s731, 128
          %s733 = scalar_lea.vmem [#allocation6], %s732
          %735 = dma.done %s730, 2048
        $region52: #{tpu_custom_call.1} parent=47 // pred_fallthru
          _
      $region48: #{tpu_custom_call.1} parent=5 // pred_fallthru
        _
    $region6: #{tpu_custom_call.1} parent=1 // loop_footer
      %s20 = sadd.s32 1, %s16
    $region7: #{tpu_custom_call.1} parent=1 // loop_footer_branch
      %15 = sbr.rel target = $region3
    $region8: #{tpu_custom_call.1} parent=1 // loop_exit
      _
    %736 = vsyncpa [#allocation4], 1
    %s737 = scalar_lea.sflag [#allocation4], 1
    %738 = vsyncpa %s737, 1
    %739 = vsyncpa [#allocation5], 1
    %s740 = scalar_lea.sflag [#allocation5], 1
    %741 = vsyncpa %s740, 1

</llo_original>
